<compile_context>
chip_gen: v7x
topology: tpu7x:2x2x1
jax: 0.10.0
libtpu: 0.0.40
codegen_flags: <defaults>
</compile_context>

<pallas_src>
import math

import jax
import jax.numpy as jnp
from jax.experimental import pallas as pl
from jax.experimental.pallas import tpu as pltpu


def _round_up(x: int, m: int) -> int:
    return ((x + m - 1) // m) * m


def _pad2d(a, rows, cols):
    r, c = a.shape
    if r == rows and c == cols:
        return a
    return jnp.pad(a, ((0, rows - r), (0, cols - c)))


# --------------------------------------------------------------------------- #
# Per-generation tuning.
# --------------------------------------------------------------------------- #
def _tpu_generation() -> str:
    try:
        kind = jax.devices()[0].device_kind.lower()
    except Exception:
        return "unknown"
    if "v7" in kind:
        return "v7x"
    if "v6" in kind:
        return "v6e"
    if "v5e" in kind or "v5 lite" in kind or "v5litepod" in kind:
        return "v5e"
    if "v5" in kind or "v4" in kind:      # v5p / v4: 128 MiB VMEM, 128-lane MXU
        return "v5e"
    return "unknown"


_GEN_CONFIG = {
    # tm: token-tile target, fc: dim_ff chunk target, lane_align: pad granularity
    # for dim_model / dim_ff, vmem_limit: scoped VMEM request, ncores: TCs/chip.
    "v7x":     dict(tm=512, fc=256, lane_align=256, vmem_limit=56 * 2**20, ncores=2),
    "v6e":     dict(tm=768, fc=512, lane_align=256, vmem_limit=100 * 2**20, ncores=1),
    "v5e":     dict(tm=256, fc=512, lane_align=128, vmem_limit=100 * 2**20, ncores=1),
    "unknown": dict(tm=256, fc=256, lane_align=128, vmem_limit=48 * 2**20, ncores=1),
}


# --------------------------------------------------------------------------- #
# One-time (init) weight preparation.
# --------------------------------------------------------------------------- #
def prepare_ffn_params(w_in, b_in, w_out, b_out, *,
                       compute_dtype=jnp.bfloat16, lane_align=None):
    """Pad, cast and transpose the PyTorch-layout weights ONCE (init time).

    w_in:  (dim_ff, dim_model), b_in:  (dim_ff,)
    w_out: (dim_model, dim_ff), b_out: (dim_model,)

    Returns padded weights in canonical (K, N) layout so both in-kernel matmuls
    contract dim 0 of the weight (no transposes): w1t (Dp, Fp), w2t (Fp, Dp).
    """
    dim_ff, dim_model = w_in.shape
    assert w_out.shape == (dim_model, dim_ff)
    if lane_align is None:
        lane_align = _GEN_CONFIG[_tpu_generation()]["lane_align"]
    cd = jnp.dtype(compute_dtype)
    dp = _round_up(dim_model, lane_align)
    fp = _round_up(dim_ff, lane_align)
    w1t = _pad2d(w_in.T, dp, fp).astype(cd)                               # (Dp, Fp)
    w2t = _pad2d(w_out.T, fp, dp).astype(cd)                              # (Fp, Dp)
    b1 = _pad2d(b_in.reshape(1, dim_ff).astype(jnp.float32), 1, fp)       # (1, Fp)
    b2 = _pad2d(b_out.reshape(1, dim_model).astype(jnp.float32), 1, dp)   # (1, Dp)
    return dict(w1t=w1t, w2t=w2t, b1=b1, b2=b2,
                dim_model=dim_model, dim_ff=dim_ff, dp=dp, fp=fp,
                compute_dtype=cd, lane_align=lane_align)


# --------------------------------------------------------------------------- #
# Kernels.
# --------------------------------------------------------------------------- #
def _ffn_kernel_resident(x_ref, w1_ref, b1_ref, w2_ref, b2_ref, o_ref):
    """Weights VMEM-resident, single dim_ff step: out = relu(x@W1 + b1)@W2 + b2."""
    h = jnp.dot(x_ref[...], w1_ref[...], preferred_element_type=jnp.float32)
    h = jnp.maximum(h + b1_ref[...], 0.0)                     # f32 bias + ReLU (VPU)
    o_ref[...] = (jnp.dot(h.astype(w2_ref.dtype), w2_ref[...],
                          preferred_element_type=jnp.float32)
                  + b2_ref[...]).astype(o_ref.dtype)


def _ffn_kernel_tiled(x_ref, w1_ref, b1_ref, w2_ref, b2_ref, o_ref, acc_ref):
    """One (token-tile, dim_ff-chunk) step; f32 accumulator persists over F steps.

    x_ref:(tm,Dp)  w1_ref:(Dp,fc)  b1_ref:(1,fc)  w2_ref:(fc,Dp)  b2_ref:(1,Dp)
    """
    f = pl.program_id(1)

    @pl.when(f == 0)
    def _():
        acc_ref[...] = jnp.zeros_like(acc_ref)

    h = jnp.dot(x_ref[...], w1_ref[...], preferred_element_type=jnp.float32)
    h = jnp.maximum(h + b1_ref[...], 0.0)
    acc_ref[...] += jnp.dot(h.astype(w2_ref.dtype), w2_ref[...],
                            preferred_element_type=jnp.float32)

    @pl.when(f == pl.num_programs(1) - 1)
    def _():
        o_ref[...] = (acc_ref[...] + b2_ref[...]).astype(o_ref.dtype)


# --------------------------------------------------------------------------- #
# Wrapper.
# --------------------------------------------------------------------------- #
def feedforward_pallas(x, params, *, tm=None, fc=None, force_tiled=False):
    """Fused feed-forward w_out(relu(w_in(x))) using pre-prepared `params`.

    x: (..., dim_model).  Returns array with x's shape and dtype.
    """
    orig_shape = x.shape
    out_dtype = x.dtype
    dim_model = params["dim_model"]
    assert x.shape[-1] == dim_model
    cd = params["compute_dtype"]
    cd_bytes = cd.itemsize
    out_bytes = jnp.dtype(out_dtype).itemsize
    dp, fp = params["dp"], params["fp"]
    lane = params["lane_align"]

    cfg = _GEN_CONFIG[_tpu_generation()]
    vmem_limit = cfg["vmem_limit"]
    budget = int(vmem_limit * 0.85)

    x2d = x.reshape(-1, dim_model)
    tokens = x2d.shape[0]
    sublane = 16 if cd_bytes < 4 else 8

    # ---- Token tile (per-generation target, clamped to the problem). -------
    tm_target = cfg["tm"] if tm is None else tm
    tm_eff = min(_round_up(tm_target, sublane), _round_up(tokens, sublane))
    if cfg["ncores"] > 1:
        # v7x: keep >= 2 token tiles so the "parallel" axis feeds both TensorCores.
        while pl.cdiv(tokens, tm_eff) < cfg["ncores"]:
            new_tm = _round_up(max(sublane, tm_eff // 2), sublane)
            if new_tm >= tm_eff:
                break
            tm_eff = new_tm

    # ---- VMEM-footprint models (include double buffers and the h temp). ----
    def vmem_resident(tm_):
        return (2 * tm_ * dp * cd_bytes + 2 * tm_ * dp * out_bytes   # x, out
                + 4 * dp * fp * cd_bytes                             # w1t + w2t (x2 buf)
                + tm_ * fp * (4 + cd_bytes)                          # h f32 + cast copy
                + 4 * (fp + dp) * 4)                                 # biases

    def vmem_tiled(tm_, fc_):
        return (2 * tm_ * dp * cd_bytes + 2 * tm_ * dp * out_bytes
                + tm_ * dp * 4                                       # acc scratch
                + 4 * dp * fc_ * cd_bytes                            # w1/w2 chunks (x2 buf)
                + tm_ * fc_ * (4 + cd_bytes)                         # h f32 + cast copy
                + 4 * (fc_ + dp) * 4)

    resident = (not force_tiled) and vmem_resident(tm_eff) <= budget

    if resident:
        fc_eff = fp
    else:
        # fc must be a lane-aligned exact divisor of Fp (no wasted MXU flops).
        fc_target = _round_up(cfg["fc"] if fc is None else fc, lane)
        fc_divs = [d for d in range(lane, fp + 1, lane) if fp % d == 0]
        fc_eff = max([d for d in fc_divs if d <= fc_target], default=lane)
        while vmem_tiled(tm_eff, fc_eff) > budget:
            smaller = [d for d in fc_divs if d < fc_eff]
            if smaller:
                fc_eff = smaller[-1]
            elif tm_eff > sublane:
                tm_eff = _round_up(max(sublane, tm_eff // 2), sublane)
            else:
                break

    tokens_p = _round_up(tokens, tm_eff)
    n_tok = tokens_p // tm_eff

    # Per-call activation prep only (weights were prepped at init).
    # TODO(synk): consider CompilerParams(allow_input_fusion=...) to fuse this
    # pad/cast into the pallas_call instead of a separate XLA op.
    xp = _pad2d(x2d, tokens_p, dp).astype(cd)

    flops = 2 * tokens_p * dp * fp * 2
    w_bytes = (params["w1t"].size + params["w2t"].size) * cd_bytes
    b_bytes = (params["b1"].size + params["b2"].size) * 4
    w_reads = 1 if resident else n_tok
    bytes_accessed = (xp.size * cd_bytes + tokens_p * dp * out_bytes
                      + w_reads * w_bytes + b_bytes)

    compiler_params = pltpu.CompilerParams(
        dimension_semantics=("parallel",) if resident else ("parallel", "arbitrary"),
        vmem_limit_bytes=vmem_limit)
    cost = pl.CostEstimate(flops=int(flops), transcendentals=0,
                           bytes_accessed=int(bytes_accessed))

    if resident:
        out_p = pl.pallas_call(
            _ffn_kernel_resident,
            out_shape=jax.ShapeDtypeStruct((tokens_p, dp), out_dtype),
            grid_spec=pltpu.PrefetchScalarGridSpec(
                num_scalar_prefetch=0,
                grid=(n_tok,),
                in_specs=[
                    pl.BlockSpec((tm_eff, dp), lambda i: (i, 0)),   # x tile
                    pl.BlockSpec((dp, fp), lambda i: (0, 0)),       # w1t (resident)
                    pl.BlockSpec((1, fp), lambda i: (0, 0)),        # b1
                    pl.BlockSpec((fp, dp), lambda i: (0, 0)),       # w2t (resident)
                    pl.BlockSpec((1, dp), lambda i: (0, 0)),        # b2
                ],
                out_specs=pl.BlockSpec((tm_eff, dp), lambda i: (i, 0)),
            ),
            compiler_params=compiler_params,
            cost_estimate=cost,
        )(xp, params["w1t"], params["b1"], params["w2t"], params["b2"])
    else:
        n_f = fp // fc_eff
        out_p = pl.pallas_call(
            _ffn_kernel_tiled,
            out_shape=jax.ShapeDtypeStruct((tokens_p, dp), out_dtype),
            grid_spec=pltpu.PrefetchScalarGridSpec(
                num_scalar_prefetch=0,
                grid=(n_tok, n_f),
                in_specs=[
                    pl.BlockSpec((tm_eff, dp), lambda i, f: (i, 0)),   # x tile
                    pl.BlockSpec((dp, fc_eff), lambda i, f: (0, f)),   # w1t chunk
                    pl.BlockSpec((1, fc_eff), lambda i, f: (0, f)),    # b1 chunk
                    pl.BlockSpec((fc_eff, dp), lambda i, f: (f, 0)),   # w2t chunk
                    pl.BlockSpec((1, dp), lambda i, f: (0, 0)),        # b2
                ],
                out_specs=pl.BlockSpec((tm_eff, dp), lambda i, f: (i, 0)),
                scratch_shapes=[pltpu.VMEM((tm_eff, dp), jnp.float32)],
            ),
            compiler_params=compiler_params,
            cost_estimate=cost,
        )(xp, params["w1t"], params["b1"], params["w2t"], params["b2"])

    return out_p[:tokens, :dim_model].reshape(orig_shape)


def feedforward_pallas_from_torch_layout(x, w_in, b_in, w_out, b_out, *,
                                         compute_dtype=jnp.bfloat16, **kw):
    """Convenience wrapper; in a real model call prepare_ffn_params once at init."""
    params = prepare_ffn_params(w_in, b_in, w_out, b_out, compute_dtype=compute_dtype)
    return feedforward_pallas(x, params, **kw)


# --------------------------------------------------------------------------- #
# Self-test.
# --------------------------------------------------------------------------- #
if __name__ == "__main__":
    # Shapes consistent with the module: batch=2, seq=8, dim_model=32, dim_ff=64.
    batch, seq, dim_model, dim_ff = 2, 8, 32, 64

    key = jax.random.PRNGKey(0)
    kx, k1w, k1b, k2w, k2b = jax.random.split(key, 5)
    x = jax.random.normal(kx, (batch, seq, dim_model), jnp.float32)

    # torch.nn.Linear-style init: U(-k, k), k = 1/sqrt(fan_in).
    k1 = 1.0 / math.sqrt(dim_model)
    k2 = 1.0 / math.sqrt(dim_ff)
    w_in = jax.random.uniform(k1w, (dim_ff, dim_model), jnp.float32, -k1, k1)
    b_in = jax.random.uniform(k1b, (dim_ff,), jnp.float32, -k1, k1)
    w_out = jax.random.uniform(k2w, (dim_model, dim_ff), jnp.float32, -k2, k2)
    b_out = jax.random.uniform(k2b, (dim_model,), jnp.float32, -k2, k2)

    # Plain-JAX reference (same math as the PyTorch module).
    x2d = x.reshape(-1, dim_model)
    ref = (jnp.maximum(x2d @ w_in.T + b_in, 0.0) @ w_out.T + b_out).reshape(x.shape)

    # 1) Exact f32 compute path (weights-resident kernel).
    p_f32 = prepare_ffn_params(w_in, b_in, w_out, b_out, compute_dtype=jnp.float32)
    out_f32 = feedforward_pallas(x, p_f32)
    jax.block_until_ready(out_f32)
    assert out_f32.shape == x.shape and out_f32.dtype == x.dtype
    assert jnp.allclose(out_f32, ref, atol=1e-5, rtol=1e-5), "f32 resident kernel mismatch"

    # 2) Default bf16 compute path (f32 accumulation/epilogue) — looser tolerance.
    p_bf16 = prepare_ffn_params(w_in, b_in, w_out, b_out)   # bf16 is the default
    out_bf16 = feedforward_pallas(x, p_bf16)
    jax.block_until_ready(out_bf16)
    assert jnp.allclose(out_bf16, ref, atol=1e-1, rtol=1e-1), "bf16 resident kernel mismatch"

    # 3) Larger shape forcing the dim_ff-tiled (accumulator) kernel path.
    b3, s3, dm3, df3 = 4, 64, 256, 512
    key3 = jax.random.PRNGKey(1)
    kx3, kw3a, kb3a, kw3b, kb3b = jax.random.split(key3, 5)
    x3 = jax.random.normal(kx3, (b3, s3, dm3), jnp.float32)
    k3a = 1.0 / math.sqrt(dm3)
    k3b = 1.0 / math.sqrt(df3)
    w_in3 = jax.random.uniform(kw3a, (df3, dm3), jnp.float32, -k3a, k3a)
    b_in3 = jax.random.uniform(kb3a, (df3,), jnp.float32, -k3a, k3a)
    w_out3 = jax.random.uniform(kw3b, (dm3, df3), jnp.float32, -k3b, k3b)
    b_out3 = jax.random.uniform(kb3b, (dm3,), jnp.float32, -k3b, k3b)
    x3_2d = x3.reshape(-1, dm3)
    ref3 = (jnp.maximum(x3_2d @ w_in3.T + b_in3, 0.0) @ w_out3.T + b_out3).reshape(x3.shape)

    p3 = prepare_ffn_params(w_in3, b_in3, w_out3, b_out3,
                            compute_dtype=jnp.float32, lane_align=128)
    out3 = feedforward_pallas(x3, p3, tm=64, fc=128, force_tiled=True)
    jax.block_until_ready(out3)
    assert jnp.allclose(out3, ref3, atol=1e-4, rtol=1e-4), "tiled kernel mismatch"

    print("KERNEL_OK")
</pallas_src>

<mosaic_0001>
module attributes {stable_mosaic.version = 11 : i64} {
  func.func @_ffn_kernel_resident(%arg0: i32, %arg1: memref<16x128xf32, #tpu.memory_space<vmem>>, %arg2: memref<128x128xf32, #tpu.memory_space<vmem>>, %arg3: memref<1x128xf32, #tpu.memory_space<vmem>>, %arg4: memref<128x128xf32, #tpu.memory_space<vmem>>, %arg5: memref<1x128xf32, #tpu.memory_space<vmem>>, %arg6: memref<16x128xf32, #tpu.memory_space<vmem>>) attributes {dimension_semantics = [#tpu.dimension_semantics<parallel>], iteration_bounds = array<i64: 1>, scalar_prefetch = 0 : i64, scratch_operands = 0 : i64, tpu.core_type = #tpu.core_type<tc>, window_params = [{transform_indices = @transform_0, window_bounds = array<i64: 16, 128>}, {pipeline_mode = #tpu.pipeline_mode<synchronous>, transform_indices = @transform_1, window_bounds = array<i64: 128, 128>}, {pipeline_mode = #tpu.pipeline_mode<synchronous>, transform_indices = @transform_2, window_bounds = array<i64: 1, 128>}, {pipeline_mode = #tpu.pipeline_mode<synchronous>, transform_indices = @transform_3, window_bounds = array<i64: 128, 128>}, {pipeline_mode = #tpu.pipeline_mode<synchronous>, transform_indices = @transform_4, window_bounds = array<i64: 1, 128>}, {transform_indices = @transform_5, window_bounds = array<i64: 16, 128>}]} {
    %c0 = arith.constant 0 : index
    %c0_0 = arith.constant 0 : index
    %0 = vector.load %arg1[%c0, %c0_0] : memref<16x128xf32, #tpu.memory_space<vmem>>, vector<16x128xf32>
    %c0_1 = arith.constant 0 : index
    %c0_2 = arith.constant 0 : index
    %1 = vector.load %arg2[%c0_1, %c0_2] : memref<128x128xf32, #tpu.memory_space<vmem>>, vector<128x128xf32>
    %cst = arith.constant dense<0.000000e+00> : vector<16x128xf32>
    %2 = tpu.matmul %0, %1, %cst {dimension_numbers = #tpu.dot_dimension_numbers<[1], [0], [0], [1], [0, 0, 1, 1], [], []>} : vector<16x128xf32>, vector<128x128xf32>, vector<16x128xf32> -> vector<16x128xf32>
    %c0_3 = arith.constant 0 : index
    %c0_4 = arith.constant 0 : index
    %3 = vector.load %arg3[%c0_3, %c0_4] : memref<1x128xf32, #tpu.memory_space<vmem>>, vector<1x128xf32>
    %4 = vector.broadcast %3 : vector<1x128xf32> to vector<16x128xf32>
    %5 = arith.addf %2, %4 : vector<16x128xf32>
    %cst_5 = arith.constant 0.000000e+00 : f32
    %6 = vector.broadcast %cst_5 : f32 to vector<16x128xf32>
    %7 = arith.maximumf %5, %6 : vector<16x128xf32>
    %c0_6 = arith.constant 0 : index
    %c0_7 = arith.constant 0 : index
    %8 = vector.load %arg4[%c0_6, %c0_7] : memref<128x128xf32, #tpu.memory_space<vmem>>, vector<128x128xf32>
    %cst_8 = arith.constant dense<0.000000e+00> : vector<16x128xf32>
    %9 = tpu.matmul %7, %8, %cst_8 {dimension_numbers = #tpu.dot_dimension_numbers<[1], [0], [0], [1], [0, 0, 1, 1], [], []>} : vector<16x128xf32>, vector<128x128xf32>, vector<16x128xf32> -> vector<16x128xf32>
    %c0_9 = arith.constant 0 : index
    %c0_10 = arith.constant 0 : index
    %10 = vector.load %arg5[%c0_9, %c0_10] : memref<1x128xf32, #tpu.memory_space<vmem>>, vector<1x128xf32>
    %11 = vector.broadcast %10 : vector<1x128xf32> to vector<16x128xf32>
    %12 = arith.addf %9, %11 : vector<16x128xf32>
    %c0_11 = arith.constant 0 : index
    %c0_12 = arith.constant 0 : index
    %13 = vector.load %arg6[%c0_11, %c0_12] : memref<16x128xf32, #tpu.memory_space<vmem>>, vector<16x128xf32>
    tpu.vector_store %arg6[%c0_11, %c0_12], %12 {strides = array<i32>} : memref<16x128xf32, #tpu.memory_space<vmem>>, vector<16x128xf32>,
    return
  }
  func.func @transform_0(%arg0: i32) -> (i32, i32) {
    %c0_i32 = arith.constant 0 : i32
    %c0_i32_0 = arith.constant 0 : i32
    return %arg0, %c0_i32 : i32, i32
  }
  func.func @transform_1(%arg0: i32) -> (i32, i32) {
    %c0_i32 = arith.constant 0 : i32
    %c0_i32_0 = arith.constant 0 : i32
    %c0_i32_1 = arith.constant 0 : i32
    return %c0_i32, %c0_i32_0 : i32, i32
  }
  func.func @transform_2(%arg0: i32) -> (i32, i32) {
    %c0_i32 = arith.constant 0 : i32
    %c0_i32_0 = arith.constant 0 : i32
    %c0_i32_1 = arith.constant 0 : i32
    return %c0_i32, %c0_i32_0 : i32, i32
  }
  func.func @transform_3(%arg0: i32) -> (i32, i32) {
    %c0_i32 = arith.constant 0 : i32
    %c0_i32_0 = arith.constant 0 : i32
    %c0_i32_1 = arith.constant 0 : i32
    return %c0_i32, %c0_i32_0 : i32, i32
  }
  func.func @transform_4(%arg0: i32) -> (i32, i32) {
    %c0_i32 = arith.constant 0 : i32
    %c0_i32_0 = arith.constant 0 : i32
    %c0_i32_1 = arith.constant 0 : i32
    return %c0_i32, %c0_i32_0 : i32, i32
  }
  func.func @transform_5(%arg0: i32) -> (i32, i32) {
    %c0_i32 = arith.constant 0 : i32
    %c0_i32_0 = arith.constant 0 : i32
    return %arg0, %c0_i32 : i32, i32
  }
}

</mosaic_0001>

<llo_original>
// kernel: tpu_custom_call.1
$region0: #{tpu_custom_call.1}
  #allocation0 [shape = 'u32[]', space=smem, size = 0x4, offset = 0x4, fixed_abs, tag = 'smem constant byte address 0x4 - core index']
  #allocation1 [shape = 'u32[144,128]{1,0:T(1,128)}', space=vmem, size = 0x12000, scoped, tag = 'internal scratch']
  %s0 = inlined_call_operand.hbm [shape: f32[16,128], index: 0, kind: input, shape index: {}]
  %s1 = inlined_call_operand.hbm [shape: f32[128,128], index: 1, kind: input, shape index: {}]
  %s2 = inlined_call_operand.vmem [shape: f32[1,128], index: 2, kind: input, shape index: {}]
  %s3 = inlined_call_operand.hbm [shape: f32[128,128], index: 3, kind: input, shape index: {}]
  %s4 = inlined_call_operand.vmem [shape: f32[1,128], index: 4, kind: input, shape index: {}]
  %s5 = inlined_call_operand.hbm [shape: f32[16,128], index: 5, kind: output, shape index: {}]
  %s6 = sld [smem:[#allocation0]]
  $region42: #{tpu_custom_call.1} parent=0
    _
  %s8 = ssub.s32 1, %s6
  %s9 = scalar_select 0, %s8, %s6
  $region1: #{tpu_custom_call.1} parent=0
    #allocation2 [shape = 'u8[8192]{0}', space=vmem, size = 0x2000, scoped, tag = 'input window, operand 0, single buffered']
    #allocation3 [shape = 's32[1]{0}', space=sflag, size = 0x4, scoped, tag = 'scoped memory for tpu_custom_call.1']
    #allocation4 [shape = 's32[1]{0}', space=sflag, size = 0x4, scoped, tag = 'scoped memory for tpu_custom_call.1']
    #allocation5 [shape = 'u8[65536]{0}', space=vmem, size = 0x10000, scoped, tag = 'input window, operand 1, single buffered']
    #allocation6 [shape = 's32[1]{0}', space=sflag, size = 0x4, scoped, tag = 'scoped memory for tpu_custom_call.1']
    #allocation7 [shape = 'u8[65536]{0}', space=vmem, size = 0x10000, scoped, tag = 'input window, operand 3, single buffered']
    #allocation8 [shape = 'u8[8192]{0}', space=vmem, size = 0x2000, scoped, tag = 'output window, operand 0, single buffered']
    %10 = vsyncpa [#allocation3], 0
    %11 = vsyncpa [#allocation6], 0
    %12 = vsyncpa [#allocation4], 0
    // Predicated region
    $region2: #{tpu_custom_call.1} parent=1 // pred_check
      _
    $region3: #{tpu_custom_call.1} parent=1 // pred_check_branch
      %14 = sbr.rel (0) target = $region5
    $region4: #{tpu_custom_call.1} parent=1 // pred_region
      %s16 = ssub.s32 256, 256
      %17 = vsyncadd [#allocation3], %s16
      %s18 = sshll.u32 [#allocation2], 4
      %s19 = int_to_ptr.vmem [resolvable:$true] %s18
      %24 = dma.hbm_to_vmem [thread:$0]  %s0, 256, %s19, [#allocation3], 128, 128, 8
    $region5: #{tpu_custom_call.1} parent=1 // pred_fallthru
      _
    // Predicated region
    $region6: #{tpu_custom_call.1} parent=1 // pred_check
      _
    $region7: #{tpu_custom_call.1} parent=1 // pred_check_branch
      %26 = sbr.rel (0) target = $region9
    $region8: #{tpu_custom_call.1} parent=1 // pred_region
      %s28 = ssub.s32 2048, 2048
      %29 = vsyncadd [#allocation6], %s28
      %s30 = sshll.u32 [#allocation5], 4
      %s31 = int_to_ptr.vmem [resolvable:$true] %s30
      %36 = dma.hbm_to_vmem [thread:$0]  %s1, 2048, %s31, [#allocation6], 128, 128, 8
    $region9: #{tpu_custom_call.1} parent=1 // pred_fallthru
      _
    // Predicated region
    $region10: #{tpu_custom_call.1} parent=1 // pred_check
      _
    $region11: #{tpu_custom_call.1} parent=1 // pred_check_branch
      %38 = sbr.rel (0) target = $region13
    $region12: #{tpu_custom_call.1} parent=1 // pred_region
      _
    $region13: #{tpu_custom_call.1} parent=1 // pred_fallthru
      _
    // Predicated region
    $region14: #{tpu_custom_call.1} parent=1 // pred_check
      _
    $region15: #{tpu_custom_call.1} parent=1 // pred_check_branch
      %40 = sbr.rel (0) target = $region17
    $region16: #{tpu_custom_call.1} parent=1 // pred_region
      %s42 = ssub.s32 2048, 2048
      %43 = vsyncadd [#allocation6], %s42
      %s44 = sshll.u32 [#allocation7], 4
      %s45 = int_to_ptr.vmem [resolvable:$true] %s44
      %50 = dma.hbm_to_vmem [thread:$0]  %s3, 2048, %s45, [#allocation6], 128, 128, 8
    $region17: #{tpu_custom_call.1} parent=1 // pred_fallthru
      _
    // Predicated region
    $region18: #{tpu_custom_call.1} parent=1 // pred_check
      _
    $region19: #{tpu_custom_call.1} parent=1 // pred_check_branch
      %52 = sbr.rel (0) target = $region21
    $region20: #{tpu_custom_call.1} parent=1 // pred_region
      _
    $region21: #{tpu_custom_call.1} parent=1 // pred_fallthru
      _
    // Predicated region
    $region22: #{tpu_custom_call.1} parent=1 // pred_check
      _
    $region23: #{tpu_custom_call.1} parent=1 // pred_check_branch
      %54 = sbr.rel (0) target = $region25
    $region24: #{tpu_custom_call.1} parent=1 // pred_region
      %55 = dma.done [#allocation3], 256
    $region25: #{tpu_custom_call.1} parent=1 // pred_fallthru
      _
    // Predicated region
    $region26: #{tpu_custom_call.1} parent=1 // pred_check
      _
    $region27: #{tpu_custom_call.1} parent=1 // pred_check_branch
      %57 = sbr.rel (0) target = $region29
    $region28: #{tpu_custom_call.1} parent=1 // pred_region
      %58 = dma.done [#allocation6], 2048
    $region29: #{tpu_custom_call.1} parent=1 // pred_fallthru
      _
    // Predicated region
    $region30: #{tpu_custom_call.1} parent=1 // pred_check
      _
    $region31: #{tpu_custom_call.1} parent=1 // pred_check_branch
      %60 = sbr.rel (0) target = $region33
    $region32: #{tpu_custom_call.1} parent=1 // pred_region
      %61 = dma.done [#allocation6], 2048
    $region33: #{tpu_custom_call.1} parent=1 // pred_fallthru
      _
    %v62 = vld [vmem:[#allocation2] sm:$0xff]
    %v63 = vld [vmem:[#allocation2 + $0x8] sm:$0xff]
    %v64 = vld [vmem:[#allocation5] sm:$0xff]
    %v65 = vld [vmem:[#allocation5 + $0x8] sm:$0xff]
    %v66 = vld [vmem:[#allocation5 + $0x10] sm:$0xff]
    %v67 = vld [vmem:[#allocation5 + $0x18] sm:$0xff]
    %v68 = vld [vmem:[#allocation5 + $0x20] sm:$0xff]
    %v69 = vld [vmem:[#allocation5 + $0x28] sm:$0xff]
    %v70 = vld [vmem:[#allocation5 + $0x30] sm:$0xff]
    %v71 = vld [vmem:[#allocation5 + $0x38] sm:$0xff]
    %v72 = vld [vmem:[#allocation5 + $0x40] sm:$0xff]
    %v73 = vld [vmem:[#allocation5 + $0x48] sm:$0xff]
    %v74 = vld [vmem:[#allocation5 + $0x50] sm:$0xff]
    %v75 = vld [vmem:[#allocation5 + $0x58] sm:$0xff]
    %v76 = vld [vmem:[#allocation5 + $0x60] sm:$0xff]
    %v77 = vld [vmem:[#allocation5 + $0x68] sm:$0xff]
    %v78 = vld [vmem:[#allocation5 + $0x70] sm:$0xff]
    %v79 = vld [vmem:[#allocation5 + $0x78] sm:$0xff]
    %v80 = vld [vmem:[%s2] sm:$0x1]
    %v82 = vlaneseq
    %v83 = vshrl.u32 %v82, 7
    %v84 = vsub.s32 0, %v83
    %v85 = vrot.slane %v80, %v84
    %87 = vmatprep.subr.mxu0 0.0
    %88 = vmatpush1.msra.mxu0 %v64
    %89 = vmatprep.subr.mxu0 0.0
    %90 = vmatpush1.msra.mxu0 %v65
    %91 = vmatprep.subr.mxu0 0.0
    %92 = vmatpush1.msra.mxu0 %v66
    %93 = vmatprep.subr.mxu0 0.0
    %94 = vmatpush1.msra.mxu0 %v67
    %95 = vmatprep.subr.mxu0 0.0
    %96 = vmatpush1.msra.mxu0 %v68
    %97 = vmatprep.subr.mxu0 0.0
    %98 = vmatpush1.msra.mxu0 %v69
    %99 = vmatprep.subr.mxu0 0.0
    %100 = vmatpush1.msra.mxu0 %v70
    %101 = vmatprep.subr.mxu0 0.0
    %102 = vmatpush1.msra.mxu0 %v71
    %103 = vmatprep.subr.mxu0 0.0
    %104 = vmatpush1.msra.mxu0 %v72
    %105 = vmatprep.subr.mxu0 0.0
    %106 = vmatpush1.msra.mxu0 %v73
    %107 = vmatprep.subr.mxu0 0.0
    %108 = vmatpush1.msra.mxu0 %v74
    %109 = vmatprep.subr.mxu0 0.0
    %110 = vmatpush1.msra.mxu0 %v75
    %111 = vmatprep.subr.mxu0 0.0
    %112 = vmatpush1.msra.mxu0 %v76
    %113 = vmatprep.subr.mxu0 0.0
    %114 = vmatpush1.msra.mxu0 %v77
    %115 = vmatprep.subr.mxu0 0.0
    %116 = vmatpush1.msra.mxu0 %v78
    %117 = vmatprep.subr.mxu0 0.0
    %118 = vmatpush1.msra.mxu0 %v79
    %119 = vmatprep.subr.mxu0 0.0
    %120 = vmatpush1.msra.mxu0 0.0
    %121 = vmatprep.subr.mxu0 0.0
    %122 = vmatpush1.msra.mxu0 0.0
    %123 = vmatprep.subr.mxu0 0.0
    %124 = vmatpush1.msra.mxu0 0.0
    %125 = vmatprep.subr.mxu0 0.0
    %126 = vmatpush1.msra.mxu0 0.0
    %127 = vmatprep.subr.mxu0 0.0
    %128 = vmatpush1.msra.mxu0 0.0
    %129 = vmatprep.subr.mxu0 0.0
    %130 = vmatpush1.msra.mxu0 0.0
    %131 = vmatprep.subr.mxu0 0.0
    %132 = vmatpush1.msra.mxu0 0.0
    %133 = vmatprep.subr.mxu0 0.0
    %134 = vmatpush1.msra.mxu0 0.0
    %135 = vmatprep.subr.mxu0 0.0
    %136 = vmatpush1.msra.mxu0 0.0
    %137 = vmatprep.subr.mxu0 0.0
    %138 = vmatpush1.msra.mxu0 0.0
    %139 = vmatprep.subr.mxu0 0.0
    %140 = vmatpush1.msra.mxu0 0.0
    %141 = vmatprep.subr.mxu0 0.0
    %142 = vmatpush1.msra.mxu0 0.0
    %143 = vmatprep.subr.mxu0 0.0
    %144 = vmatpush1.msra.mxu0 0.0
    %145 = vmatprep.subr.mxu0 0.0
    %146 = vmatpush1.msra.mxu0 0.0
    %147 = vmatprep.subr.mxu0 0.0
    %148 = vmatpush1.msra.mxu0 0.0
    %149 = vmatprep.subr.mxu0 0.0
    %150 = vmatpush1.msra.mxu0 0.0
    %151 = vmatprep.mubr.f32.mxu0 0.0
    %152 = vmatmul.mubr.f32.gmra.mrb[0].mxu0 %v62
    %v153 = vpop.f32.mrb[0].mxu0
    %v154 = vadd.f32 %v85, %v153
    %v155 = vpop.f32.mrb[0].mxu0
    %156 = vmatprep.mubr.f32.mxu0 0.0
    %157 = vmatmul.mubr.f32.gmra.mrb[0].mxu0 %v63
    %v158 = vpop.f32.mrb[0].mxu0
    %v159 = vadd.f32 %v85, %v158
    %v160 = vpop.f32.mrb[0].mxu0
    %161 = vdwg.mxu0
    %v162 = vmax.f32 %v154, 0.0
    %v163 = vmax.f32 %v159, 0.0
    %v164 = vld [vmem:[#allocation7] sm:$0xff]
    %v165 = vld [vmem:[#allocation7 + $0x8] sm:$0xff]
    %v166 = vld [vmem:[#allocation7 + $0x10] sm:$0xff]
    %v167 = vld [vmem:[#allocation7 + $0x18] sm:$0xff]
    %v168 = vld [vmem:[#allocation7 + $0x20] sm:$0xff]
    %v169 = vld [vmem:[#allocation7 + $0x28] sm:$0xff]
    %v170 = vld [vmem:[#allocation7 + $0x30] sm:$0xff]
    %v171 = vld [vmem:[#allocation7 + $0x38] sm:$0xff]
    %v172 = vld [vmem:[#allocation7 + $0x40] sm:$0xff]
    %v173 = vld [vmem:[#allocation7 + $0x48] sm:$0xff]
    %v174 = vld [vmem:[#allocation7 + $0x50] sm:$0xff]
    %v175 = vld [vmem:[#allocation7 + $0x58] sm:$0xff]
    %v176 = vld [vmem:[#allocation7 + $0x60] sm:$0xff]
    %v177 = vld [vmem:[#allocation7 + $0x68] sm:$0xff]
    %v178 = vld [vmem:[#allocation7 + $0x70] sm:$0xff]
    %v179 = vld [vmem:[#allocation7 + $0x78] sm:$0xff]
    %v180 = vld [vmem:[%s4] sm:$0x1]
    %v182 = vlaneseq
    %v183 = vshrl.u32 %v182, 7
    %v184 = vsub.s32 0, %v183
    %v185 = vrot.slane %v180, %v184
    %187 = vmatprep.subr.mxu0 0.0
    %188 = vmatpush1.msra.mxu0 %v164
    %189 = vmatprep.subr.mxu0 0.0
    %190 = vmatpush1.msra.mxu0 %v165
    %191 = vmatprep.subr.mxu0 0.0
    %192 = vmatpush1.msra.mxu0 %v166
    %193 = vmatprep.subr.mxu0 0.0
    %194 = vmatpush1.msra.mxu0 %v167
    %195 = vmatprep.subr.mxu0 0.0
    %196 = vmatpush1.msra.mxu0 %v168
    %197 = vmatprep.subr.mxu0 0.0
    %198 = vmatpush1.msra.mxu0 %v169
    %199 = vmatprep.subr.mxu0 0.0
    %200 = vmatpush1.msra.mxu0 %v170
    %201 = vmatprep.subr.mxu0 0.0
    %202 = vmatpush1.msra.mxu0 %v171
    %203 = vmatprep.subr.mxu0 0.0
    %204 = vmatpush1.msra.mxu0 %v172
    %205 = vmatprep.subr.mxu0 0.0
    %206 = vmatpush1.msra.mxu0 %v173
    %207 = vmatprep.subr.mxu0 0.0
    %208 = vmatpush1.msra.mxu0 %v174
    %209 = vmatprep.subr.mxu0 0.0
    %210 = vmatpush1.msra.mxu0 %v175
    %211 = vmatprep.subr.mxu0 0.0
    %212 = vmatpush1.msra.mxu0 %v176
    %213 = vmatprep.subr.mxu0 0.0
    %214 = vmatpush1.msra.mxu0 %v177
    %215 = vmatprep.subr.mxu0 0.0
    %216 = vmatpush1.msra.mxu0 %v178
    %217 = vmatprep.subr.mxu0 0.0
    %218 = vmatpush1.msra.mxu0 %v179
    %219 = vmatprep.subr.mxu0 0.0
    %220 = vmatpush1.msra.mxu0 0.0
    %221 = vmatprep.subr.mxu0 0.0
    %222 = vmatpush1.msra.mxu0 0.0
    %223 = vmatprep.subr.mxu0 0.0
    %224 = vmatpush1.msra.mxu0 0.0
    %225 = vmatprep.subr.mxu0 0.0
    %226 = vmatpush1.msra.mxu0 0.0
    %227 = vmatprep.subr.mxu0 0.0
    %228 = vmatpush1.msra.mxu0 0.0
    %229 = vmatprep.subr.mxu0 0.0
    %230 = vmatpush1.msra.mxu0 0.0
    %231 = vmatprep.subr.mxu0 0.0
    %232 = vmatpush1.msra.mxu0 0.0
    %233 = vmatprep.subr.mxu0 0.0
    %234 = vmatpush1.msra.mxu0 0.0
    %235 = vmatprep.subr.mxu0 0.0
    %236 = vmatpush1.msra.mxu0 0.0
    %237 = vmatprep.subr.mxu0 0.0
    %238 = vmatpush1.msra.mxu0 0.0
    %239 = vmatprep.subr.mxu0 0.0
    %240 = vmatpush1.msra.mxu0 0.0
    %241 = vmatprep.subr.mxu0 0.0
    %242 = vmatpush1.msra.mxu0 0.0
    %243 = vmatprep.subr.mxu0 0.0
    %244 = vmatpush1.msra.mxu0 0.0
    %245 = vmatprep.subr.mxu0 0.0
    %246 = vmatpush1.msra.mxu0 0.0
    %247 = vmatprep.subr.mxu0 0.0
    %248 = vmatpush1.msra.mxu0 0.0
    %249 = vmatprep.subr.mxu0 0.0
    %250 = vmatpush1.msra.mxu0 0.0
    %251 = vmatprep.mubr.f32.mxu0 0.0
    %252 = vmatmul.mubr.f32.gmra.mrb[0].mxu0 %v162
    %v253 = vpop.f32.mrb[0].mxu0
    %v254 = vadd.f32 %v185, %v253
    %v255 = vpop.f32.mrb[0].mxu0
    %256 = vmatprep.mubr.f32.mxu0 0.0
    %257 = vmatmul.mubr.f32.gmra.mrb[0].mxu0 %v163
    %v258 = vpop.f32.mrb[0].mxu0
    %v259 = vadd.f32 %v185, %v258
    %v260 = vpop.f32.mrb[0].mxu0
    %261 = vdwg.mxu0
    %262 = vst [vmem:[#allocation8] sm:$0xff] %v254
    %263 = vst [vmem:[#allocation8 + $0x8] sm:$0xff] %v259
    // Predicated region
    $region34: #{tpu_custom_call.1} parent=1 // pred_check
      _
    $region35: #{tpu_custom_call.1} parent=1 // pred_check_branch
      %265 = sbr.rel (0) target = $region37
    $region36: #{tpu_custom_call.1} parent=1 // pred_region
      %s267 = ssub.s32 256, 256
      %268 = vsyncadd [#allocation4], %s267
      %s269 = sshll.u32 [#allocation8], 4
      %s270 = int_to_ptr.vmem [resolvable:$true] %s269
      %275 = dma.vmem_to_hbm [thread:$0]  %s270, 256, %s5, [#allocation4], 128, 128, 8
    $region37: #{tpu_custom_call.1} parent=1 // pred_fallthru
      _
    // Predicated region
    $region38: #{tpu_custom_call.1} parent=1 // pred_check
      _
    $region39: #{tpu_custom_call.1} parent=1 // pred_check_branch
      %277 = sbr.rel (0) target = $region41
    $region40: #{tpu_custom_call.1} parent=1 // pred_region
      %278 = dma.done [#allocation4], 256
    $region41: #{tpu_custom_call.1} parent=1 // pred_fallthru
      _
    %279 = vsyncpa [#allocation3], 1
    %280 = vsyncpa [#allocation6], 1
    %281 = vsyncpa [#allocation4], 1

</llo_original>
